<compile_context>
chip_gen: v5e
topology: v5e:2x2
jax: 0.10.0
libtpu: 0.0.40
codegen_flags: <defaults>
</compile_context>

<pallas_src>
import math

import jax
import jax.numpy as jnp
from jax.experimental import pallas as pl
from jax.experimental.pallas import tpu as pltpu


# -----------------------------------------------------------------------------
# Fused encoder + decoder Pallas kernel
#   grid = (B // TB, V // TV); batch-tile axis "parallel", vocab axis
#   "arbitrary".  At j == 0 the encoder, attention and fusion for all TB
#   batches are computed into a VMEM scratch; every j step streams one
#   (H, TV) slab of w_out and writes one (TB, S_tgt, TV) lane-dense bf16 tile.
# -----------------------------------------------------------------------------
def _fused_seq2seq_kernel(len_ref,                 # SMEM scalar prefetch: (B,) int32
                          src_ref,                 # (TB, S_src, H) bf16
                          tgt_ref,                 # (TB, S_tgt, H) bf16
                          w_enc_ref, b_enc_ref,    # (H, H) bf16, (1, H) f32
                          vproj_ref,               # (1, TB, 1, H) f32 (precomputed video proj)
                          w_out_ref, b_out_ref,    # (H, TV) bf16, (1, TV) f32
                          o_ref,                   # (TB, S_tgt, TV) bf16
                          fused_sc):               # VMEM (TB*S_tgt, H) bf16
    i = pl.program_id(0)
    tb, s_src, h = src_ref.shape
    s_tgt = tgt_ref.shape[1]
    tv = o_ref.shape[-1]

    @pl.when(pl.program_id(1) == 0)
    def _():
        # ---- encoder: tanh(src_emb @ W_enc + b_enc), TB batches stacked on M
        src2d = src_ref[...].reshape(tb * s_src, h)                  # bf16
        enc2d = jnp.dot(src2d, w_enc_ref[...],
                        preferred_element_type=jnp.float32)         # [TB*S_src, H]
        enc2d = jnp.tanh(enc2d + b_enc_ref[...])
        enc_bf = enc2d.astype(jnp.bfloat16).reshape(tb, s_src, h)

        # ---- decoder attention over encoder output (batched over the tile) -
        scale = 1.0 / math.sqrt(float(h))
        tgt_bf = tgt_ref[...]                                        # bf16
        scores = jnp.einsum("bqd,bkd->bqk", tgt_bf * scale, enc_bf,
                            preferred_element_type=jnp.float32)      # [TB,S_tgt,S_src]

        # mask padded source positions using src_lengths (SMEM scalars)
        col = jax.lax.broadcasted_iota(jnp.int32, scores.shape, 2)
        lens = jnp.full(scores.shape, len_ref[i * tb], dtype=jnp.int32)
        if tb > 1:
            bidx = jax.lax.broadcasted_iota(jnp.int32, scores.shape, 0)
            for t in range(1, tb):
                lens = jnp.where(bidx == t, len_ref[i * tb + t], lens)
        scores = jnp.where(col < lens, scores, -1e30)

        scores = scores - jnp.max(scores, axis=-1, keepdims=True)
        p = jnp.exp(scores)
        p = p * pl.reciprocal(jnp.sum(p, axis=-1, keepdims=True), approx=True)
        ctx = jnp.einsum("bqk,bkd->bqd", p.astype(jnp.bfloat16), enc_bf,
                         preferred_element_type=jnp.float32)         # [TB,S_tgt,H]

        # ---- fuse target, attention context and (broadcast) video feature --
        fused = jnp.tanh(tgt_bf.astype(jnp.float32) + ctx + vproj_ref[0])
        fused_sc[...] = fused.astype(jnp.bfloat16).reshape(tb * s_tgt, h)

    # ---- output projection for this vocab tile (runs every j) --------------
    logits = jnp.dot(fused_sc[...], w_out_ref[...],
                     preferred_element_type=jnp.float32)             # [TB*S_tgt, TV]
    logits = logits + b_out_ref[...]
    o_ref[...] = logits.astype(o_ref.dtype).reshape(tb, s_tgt, tv)


# -----------------------------------------------------------------------------
# Tiling / VMEM-budget helpers
# -----------------------------------------------------------------------------
def _vmem_capacity_bytes():
    try:
        info = pltpu.get_tpu_info()
        cap = getattr(info, "vmem_capacity_bytes", None)
        if cap:
            return int(cap)
    except Exception:
        pass
    return 128 * 1024 * 1024          # v5e / v6e default if query unavailable


def _footprint_bytes(tb, s_src, s_tgt, h, tv):
    blocks = (tb * s_src * h * 2          # src bf16
              + tb * s_tgt * h * 2        # tgt bf16
              + h * h * 2                 # w_enc bf16
              + h * 4                     # b_enc f32
              + tb * h * 4                # vproj tile f32
              + h * tv * 2                # w_out slab bf16
              + tv * 4                    # b_out f32
              + tb * s_tgt * tv * 2)      # logits block bf16
    scratch = tb * s_tgt * h * 2          # fused_sc bf16
    return 2 * blocks + scratch           # BlockSpec double-buffers every block


def _pick_batch_tile(b, s_tgt):
    # Fill the MXU M dim (aim for TB*S_tgt >= 256) while keeping >= 2
    # batch-tiles on the "parallel" grid axis so both v7x TensorCores work.
    best = 1
    for tb in range(1, b + 1):
        if b % tb:
            continue
        if b >= 2 and b // tb < 2:
            continue
        best = tb
        if tb * s_tgt >= 256:
            break
    return best


def _pick_vocab_tile(v, tb, s_src, s_tgt, h, budget):
    # Prefer large lane-dense (H, TV) w_out slabs (the dominant HBM stream),
    # shrinking until the double-buffered footprint fits the VMEM budget.
    for cand in (2048, 1024, 512, 256, 128):
        if v % cand == 0 and _footprint_bytes(tb, s_src, s_tgt, h, cand) <= budget:
            return cand
    return v


# -----------------------------------------------------------------------------
# pallas_call wrapper
# -----------------------------------------------------------------------------
def mm_seq2seq_pallas(src_emb_bf16, tgt_emb_bf16, src_lengths, w_enc_bf16, b_enc,
                      vproj, w_out_bf16, b_out):
    B, S_src, H = src_emb_bf16.shape
    _, S_tgt, _ = tgt_emb_bf16.shape
    V = w_out_bf16.shape[-1]

    vmem_cap = _vmem_capacity_bytes()
    budget = int(vmem_cap * 0.8)      # ~51 MiB on v7x (64), ~102 MiB on v5e/v6e (128)

    TB = _pick_batch_tile(B, S_tgt)
    TV = _pick_vocab_tile(V, TB, S_src, S_tgt, H, budget)

    # vproj shipped as (B//TB, TB, 1, H): block is full-dim on the sublane
    # axis -> no masked sub-8 sublane loads, one tiny fetch per batch-tile.
    vproj_t = vproj.reshape(B // TB, TB, 1, H)

    need = _footprint_bytes(TB, S_src, S_tgt, H, TV) + (4 << 20)
    vmem_limit = max(16 << 20, min(need, budget))

    return pl.pallas_call(
        _fused_seq2seq_kernel,
        out_shape=jax.ShapeDtypeStruct((B, S_tgt, V), jnp.bfloat16),
        grid_spec=pltpu.PrefetchScalarGridSpec(
            num_scalar_prefetch=1,                       # src_lengths -> SMEM
            grid=(B // TB, V // TV),
            in_specs=[
                pl.BlockSpec((TB, S_src, H),  lambda i, j, lens: (i, 0, 0)),
                pl.BlockSpec((TB, S_tgt, H),  lambda i, j, lens: (i, 0, 0)),
                pl.BlockSpec((H, H),          lambda i, j, lens: (0, 0)),
                pl.BlockSpec((1, H),          lambda i, j, lens: (0, 0)),
                pl.BlockSpec((1, TB, 1, H),   lambda i, j, lens: (i, 0, 0, 0)),
                pl.BlockSpec((H, TV),         lambda i, j, lens: (0, j)),
                pl.BlockSpec((1, TV),         lambda i, j, lens: (0, j)),
            ],
            out_specs=pl.BlockSpec((TB, S_tgt, TV), lambda i, j, lens: (i, 0, j)),
            scratch_shapes=[
                pltpu.VMEM((TB * S_tgt, H), jnp.bfloat16),   # fused features (MXU operand)
            ],
        ),
        # NOTE: vocab axis must stay "arbitrary": the j==0 scratch-init trick
        # requires all vocab steps of a batch-tile to run on the same core.
        compiler_params=pltpu.CompilerParams(
            dimension_semantics=("parallel", "arbitrary"),
            vmem_limit_bytes=int(vmem_limit),
        ),
    )(src_lengths, src_emb_bf16, tgt_emb_bf16, w_enc_bf16, b_enc, vproj_t,
      w_out_bf16, b_out)


# -----------------------------------------------------------------------------
# MMSeq2SeqModel forward (glue: embeddings + video projection + fused kernel)
# -----------------------------------------------------------------------------
def mm_seq2seq_forward(params, src_tokens, src_lengths, tgt_inputs, video_inputs):
    # embeddings stay in plain JAX (gather); both embedding streams shipped in
    # bf16 because they are consumed as MXU operands / low-magnitude adds.
    src_emb = jnp.take(params["src_embed"], src_tokens, axis=0).astype(jnp.bfloat16)
    tgt_emb = jnp.take(params["tgt_embed"], tgt_inputs, axis=0).astype(jnp.bfloat16)

    # hoisted video projection: one (B, Dv) @ (Dv, H) GEMM instead of a
    # degenerate per-grid-step 1-row matmul inside the kernel.
    vproj = jnp.dot(video_inputs, params["w_vid"])                   # [B, H] f32

    w_enc = params["w_enc"].astype(jnp.bfloat16)
    w_out = params["w_out"].astype(jnp.bfloat16)

    return mm_seq2seq_pallas(
        src_emb, tgt_emb, src_lengths.astype(jnp.int32),
        w_enc, params["b_enc"], vproj, w_out, params["b_out"],
    )                                                                # [B, S_tgt, vocab] bf16


# -----------------------------------------------------------------------------
# Pure-JAX reference (for a loose numerical sanity check)
# -----------------------------------------------------------------------------
def reference_forward(params, src_tokens, src_lengths, tgt_inputs, video_inputs):
    src_emb = jnp.take(params["src_embed"], src_tokens, axis=0)
    tgt_emb = jnp.take(params["tgt_embed"], tgt_inputs, axis=0)
    H = src_emb.shape[-1]

    enc = jnp.tanh(jnp.einsum("bsh,hk->bsk", src_emb, params["w_enc"])
                   + params["b_enc"])
    vproj = video_inputs @ params["w_vid"]                           # [B, H]

    scale = 1.0 / math.sqrt(float(H))
    scores = jnp.einsum("bth,bsh->bts", tgt_emb, enc) * scale
    col = jnp.arange(scores.shape[-1])[None, None, :]
    scores = jnp.where(col < src_lengths[:, None, None], scores, -1e30)
    p = jax.nn.softmax(scores, axis=-1)
    ctx = jnp.einsum("bts,bsh->bth", p, enc)

    fused = jnp.tanh(tgt_emb + ctx + vproj[:, None, :])
    logits = jnp.einsum("bth,hv->btv", fused, params["w_out"]) + params["b_out"]
    return logits


def init_params(key, vocab_src, vocab_tgt, hidden, video_dim):
    ks = jax.random.split(key, 6)
    s = 0.02
    return {
        "src_embed": s * jax.random.normal(ks[0], (vocab_src, hidden), jnp.float32),
        "tgt_embed": s * jax.random.normal(ks[1], (vocab_tgt, hidden), jnp.float32),
        "w_enc": s * jax.random.normal(ks[2], (hidden, hidden), jnp.float32),
        "b_enc": jnp.zeros((1, hidden), jnp.float32),
        "w_vid": s * jax.random.normal(ks[3], (video_dim, hidden), jnp.float32),
        "w_out": s * jax.random.normal(ks[4], (hidden, vocab_tgt), jnp.float32),
        "b_out": jnp.zeros((1, vocab_tgt), jnp.float32),
    }


if __name__ == "__main__":
    # lane-aligned small shapes: H, Dv, V multiples of 128; seq multiples of 8.
    # B=4 -> TB=2, so the "parallel" batch-tile axis has 2 steps (v7x megacore).
    B, S_SRC, S_TGT, H, DV = 4, 8, 8, 128, 128
    VOCAB_SRC, VOCAB_TGT = 256, 256

    key = jax.random.PRNGKey(0)
    k_par, k_src, k_tgt, k_vid = jax.random.split(key, 4)

    params = init_params(k_par, VOCAB_SRC, VOCAB_TGT, H, DV)

    src_tokens = jax.random.randint(k_src, (B, S_SRC), 0, VOCAB_SRC, dtype=jnp.int32)
    tgt_inputs = jax.random.randint(k_tgt, (B, S_TGT), 0, VOCAB_TGT, dtype=jnp.int32)
    src_lengths = jnp.array([S_SRC, S_SRC - 2, S_SRC, S_SRC - 3], dtype=jnp.int32)
    video_inputs = jax.random.normal(k_vid, (B, DV), jnp.float32)

    out = mm_seq2seq_forward(params, src_tokens, src_lengths, tgt_inputs, video_inputs)
    out = jax.block_until_ready(out)

    assert out.shape == (B, S_TGT, VOCAB_TGT), out.shape
    assert out.dtype == jnp.bfloat16
    out_f32 = out.astype(jnp.float32)
    assert bool(jnp.all(jnp.isfinite(out_f32)))

    ref = reference_forward(params, src_tokens, src_lengths, tgt_inputs, video_inputs)
    ref = jax.block_until_ready(ref)
    # bf16 MXU operands / bf16 logits + approx reciprocal vs f32 reference -> loose tol
    assert bool(jnp.allclose(out_f32, ref, rtol=2e-2, atol=2e-2)), (
        float(jnp.max(jnp.abs(out_f32 - ref))))

    print("KERNEL_OK")
</pallas_src>

<mosaic_0001>
module attributes {stable_mosaic.version = 11 : i64} {
  func.func @_fused_seq2seq_kernel(%arg0: i32, %arg1: i32, %arg2: memref<4xi32, #tpu.memory_space<smem>>, %arg3: memref<2x8x128xbf16, #tpu.memory_space<vmem>>, %arg4: memref<2x8x128xbf16, #tpu.memory_space<vmem>>, %arg5: memref<128x128xbf16, #tpu.memory_space<vmem>>, %arg6: memref<1x128xf32, #tpu.memory_space<vmem>>, %arg7: memref<1x2x1x128xf32, #tpu.memory_space<vmem>>, %arg8: memref<128x256xbf16, #tpu.memory_space<vmem>>, %arg9: memref<1x256xf32, #tpu.memory_space<vmem>>, %arg10: memref<2x8x256xbf16, #tpu.memory_space<vmem>>, %arg11: memref<16x128xbf16, #tpu.memory_space<vmem>>) attributes {dimension_semantics = [#tpu.dimension_semantics<parallel>, #tpu.dimension_semantics<arbitrary>], iteration_bounds = array<i64: 2, 1>, scalar_prefetch = 1 : i64, scratch_operands = 1 : i64, tpu.core_type = #tpu.core_type<tc>, window_params = [{transform_indices = @transform_0, window_bounds = array<i64: 2, 8, 128>}, {transform_indices = @transform_1, window_bounds = array<i64: 2, 8, 128>}, {pipeline_mode = #tpu.pipeline_mode<synchronous>, transform_indices = @transform_2, window_bounds = array<i64: 128, 128>}, {pipeline_mode = #tpu.pipeline_mode<synchronous>, transform_indices = @transform_3, window_bounds = array<i64: 1, 128>}, {transform_indices = @transform_4, window_bounds = array<i64: 1, 2, 1, 128>}, {transform_indices = @transform_5, window_bounds = array<i64: 128, 256>}, {transform_indices = @transform_6, window_bounds = array<i64: 1, 256>}, {transform_indices = @transform_7, window_bounds = array<i64: 2, 8, 256>}]} {
    %c0_i32 = arith.constant 0 : i32
    %0 = arith.cmpi eq, %arg1, %c0_i32 : i32
    %1 = arith.extui %0 : i1 to i32
    %c0_i32_0 = arith.constant 0 : i32
    %2 = arith.cmpi ne, %1, %c0_i32_0 : i32
    scf.if %2 {
      %c0_9 = arith.constant 0 : index
      %c0_10 = arith.constant 0 : index
      %c0_11 = arith.constant 0 : index
      %12 = vector.load %arg3[%c0_9, %c0_10, %c0_11] : memref<2x8x128xbf16, #tpu.memory_space<vmem>>, vector<2x8x128xbf16>
      %13 = vector.shape_cast %12 : vector<2x8x128xbf16> to vector<16x128xbf16>
      %c0_12 = arith.constant 0 : index
      %c0_13 = arith.constant 0 : index
      %14 = vector.load %arg5[%c0_12, %c0_13] : memref<128x128xbf16, #tpu.memory_space<vmem>>, vector<128x128xbf16>
      %cst_14 = arith.constant dense<0.000000e+00> : vector<16x128xf32>
      %15 = tpu.matmul %13, %14, %cst_14 {dimension_numbers = #tpu.dot_dimension_numbers<[1], [0], [0], [1], [0, 0, 1, 1], [], []>} : vector<16x128xbf16>, vector<128x128xbf16>, vector<16x128xf32> -> vector<16x128xf32>
      %c0_15 = arith.constant 0 : index
      %c0_16 = arith.constant 0 : index
      %16 = vector.load %arg6[%c0_15, %c0_16] : memref<1x128xf32, #tpu.memory_space<vmem>>, vector<1x128xf32>
      %17 = vector.broadcast %16 : vector<1x128xf32> to vector<16x128xf32>
      %18 = arith.addf %15, %17 : vector<16x128xf32>
      %19 = math.tanh %18 : vector<16x128xf32>
      %20 = arith.truncf %19 : vector<16x128xf32> to vector<16x128xbf16>
      %21 = vector.shape_cast %20 : vector<16x128xbf16> to vector<2x8x128xbf16>
      %c0_17 = arith.constant 0 : index
      %c0_18 = arith.constant 0 : index
      %c0_19 = arith.constant 0 : index
      %22 = vector.load %arg4[%c0_17, %c0_18, %c0_19] : memref<2x8x128xbf16, #tpu.memory_space<vmem>>, vector<2x8x128xbf16>
      %cst_20 = arith.constant 8.837890e-02 : bf16
      %23 = vector.broadcast %cst_20 : bf16 to vector<2x8x128xbf16>
      %24 = arith.mulf %22, %23 : vector<2x8x128xbf16>
      "tpu.trace_start"() <{level = 10 : i32, message = "bqd,bkd->bqk"}> : () -> ()
      %cst_21 = arith.constant dense<0.000000e+00> : vector<2x8x8xf32>
      %25 = tpu.matmul %24, %21, %cst_21 {dimension_numbers = #tpu.dot_dimension_numbers<[2], [2], [1], [1], [0, 0, 0, 1, 1, 1], [0], [0]>} : vector<2x8x128xbf16>, vector<2x8x128xbf16>, vector<2x8x8xf32> -> vector<2x8x8xf32>
      "tpu.trace_stop"() : () -> ()
      %26 = tpu.iota {dimensions = array<i32: 2>} : vector<2x8x8xi32>
      %c2_i32 = arith.constant 2 : i32
      %27 = arith.muli %arg0, %c2_i32 : i32
      %28 = arith.index_cast %27 : i32 to index
      %29 = memref.load %arg2[%28] : memref<4xi32, #tpu.memory_space<smem>>
      %30 = vector.broadcast %29 : i32 to vector<2x8x8xi32>
      %31 = tpu.iota {dimensions = array<i32: 0>} : vector<2x8x8xi32>
      %c1_i32 = arith.constant 1 : i32
      %32 = vector.broadcast %c1_i32 : i32 to vector<2x8x8xi32>
      %33 = arith.cmpi eq, %31, %32 : vector<2x8x8xi32>
      %c2_i32_22 = arith.constant 2 : i32
      %34 = arith.muli %arg0, %c2_i32_22 : i32
      %c1_i32_23 = arith.constant 1 : i32
      %35 = arith.addi %34, %c1_i32_23 : i32
      %36 = arith.index_cast %35 : i32 to index
      %37 = memref.load %arg2[%36] : memref<4xi32, #tpu.memory_space<smem>>
      %38 = vector.broadcast %37 : i32 to vector<2x8x8xi32>
      %39 = arith.select %33, %38, %30 : vector<2x8x8xi1>, vector<2x8x8xi32>
      %40 = arith.cmpi slt, %26, %39 : vector<2x8x8xi32>
      %cst_24 = arith.constant -1.000000e+30 : f32
      %41 = vector.broadcast %cst_24 : f32 to vector<2x8x8xf32>
      %42 = arith.select %40, %25, %41 : vector<2x8x8xi1>, vector<2x8x8xf32>
      %cst_25 = arith.constant dense<0xFF800000> : vector<2x8xf32>
      %43 = vector.multi_reduction <maximumf>, %42, %cst_25 [2] : vector<2x8x8xf32> to vector<2x8xf32>
      %44 = vector.shape_cast %43 : vector<2x8xf32> to vector<2x8x1xf32>
      %45 = vector.broadcast %44 : vector<2x8x1xf32> to vector<2x8x8xf32>
      %46 = arith.subf %42, %45 : vector<2x8x8xf32>
      %47 = math.exp %46 : vector<2x8x8xf32>
      %cst_26 = arith.constant dense<0.000000e+00> : vector<2x8xf32>
      %48 = vector.multi_reduction <add>, %47, %cst_26 [2] : vector<2x8x8xf32> to vector<2x8xf32>
      %49 = vector.shape_cast %48 : vector<2x8xf32> to vector<2x8x1xf32>
      %50 = tpu.reciprocal %49 {approx = true} : vector<2x8x1xf32> -> vector<2x8x1xf32>
      %51 = vector.broadcast %50 : vector<2x8x1xf32> to vector<2x8x8xf32>
      %52 = arith.mulf %47, %51 : vector<2x8x8xf32>
      %53 = arith.truncf %52 : vector<2x8x8xf32> to vector<2x8x8xbf16>
      "tpu.trace_start"() <{level = 10 : i32, message = "bqk,bkd->bqd"}> : () -> ()
      %cst_27 = arith.constant dense<0.000000e+00> : vector<2x8x128xf32>
      %54 = tpu.matmul %53, %21, %cst_27 {dimension_numbers = #tpu.dot_dimension_numbers<[2], [1], [1], [2], [0, 0, 0, 1, 1, 2], [0], [0]>} : vector<2x8x8xbf16>, vector<2x8x128xbf16>, vector<2x8x128xf32> -> vector<2x8x128xf32>
      "tpu.trace_stop"() : () -> ()
      %55 = arith.extf %22 : vector<2x8x128xbf16> to vector<2x8x128xf32>
      %56 = arith.addf %55, %54 : vector<2x8x128xf32>
      %c0_28 = arith.constant 0 : index
      %c0_29 = arith.constant 0 : index
      %c0_30 = arith.constant 0 : index
      %c0_31 = arith.constant 0 : index
      %57 = vector.load %arg7[%c0_28, %c0_29, %c0_30, %c0_31] : memref<1x2x1x128xf32, #tpu.memory_space<vmem>>, vector<1x2x1x128xf32>
      %58 = vector.shape_cast %57 : vector<1x2x1x128xf32> to vector<2x1x128xf32>
      %59 = vector.broadcast %58 : vector<2x1x128xf32> to vector<2x8x128xf32>
      %60 = arith.addf %56, %59 : vector<2x8x128xf32>
      %61 = math.tanh %60 : vector<2x8x128xf32>
      %62 = arith.truncf %61 : vector<2x8x128xf32> to vector<2x8x128xbf16>
      %63 = vector.shape_cast %62 : vector<2x8x128xbf16> to vector<16x128xbf16>
      %c0_32 = arith.constant 0 : index
      %c0_33 = arith.constant 0 : index
      %64 = vector.load %arg11[%c0_32, %c0_33] : memref<16x128xbf16, #tpu.memory_space<vmem>>, vector<16x128xbf16>
      tpu.vector_store %arg11[%c0_32, %c0_33], %63 {strides = array<i32>} : memref<16x128xbf16, #tpu.memory_space<vmem>>, vector<16x128xbf16>,
    } else {
    }
    %c0 = arith.constant 0 : index
    %c0_1 = arith.constant 0 : index
    %3 = vector.load %arg11[%c0, %c0_1] : memref<16x128xbf16, #tpu.memory_space<vmem>>, vector<16x128xbf16>
    %c0_2 = arith.constant 0 : index
    %c0_3 = arith.constant 0 : index
    %4 = vector.load %arg8[%c0_2, %c0_3] : memref<128x256xbf16, #tpu.memory_space<vmem>>, vector<128x256xbf16>
    %cst = arith.constant dense<0.000000e+00> : vector<16x256xf32>
    %5 = tpu.matmul %3, %4, %cst {dimension_numbers = #tpu.dot_dimension_numbers<[1], [0], [0], [1], [0, 0, 1, 1], [], []>} : vector<16x128xbf16>, vector<128x256xbf16>, vector<16x256xf32> -> vector<16x256xf32>
    %c0_4 = arith.constant 0 : index
    %c0_5 = arith.constant 0 : index
    %6 = vector.load %arg9[%c0_4, %c0_5] : memref<1x256xf32, #tpu.memory_space<vmem>>, vector<1x256xf32>
    %7 = vector.broadcast %6 : vector<1x256xf32> to vector<16x256xf32>
    %8 = arith.addf %5, %7 : vector<16x256xf32>
    %9 = arith.truncf %8 : vector<16x256xf32> to vector<16x256xbf16>
    %10 = vector.shape_cast %9 : vector<16x256xbf16> to vector<2x8x256xbf16>
    %c0_6 = arith.constant 0 : index
    %c0_7 = arith.constant 0 : index
    %c0_8 = arith.constant 0 : index
    %11 = vector.load %arg10[%c0_6, %c0_7, %c0_8] : memref<2x8x256xbf16, #tpu.memory_space<vmem>>, vector<2x8x256xbf16>
    tpu.vector_store %arg10[%c0_6, %c0_7, %c0_8], %10 {strides = array<i32>} : memref<2x8x256xbf16, #tpu.memory_space<vmem>>, vector<2x8x256xbf16>,
    return
  }
  func.func @transform_0(%arg0: i32, %arg1: i32, %arg2: memref<4xi32, #tpu.memory_space<smem>>) -> (i32, i32, i32) {
    %c0_i32 = arith.constant 0 : i32
    %c0_i32_0 = arith.constant 0 : i32
    %c0_i32_1 = arith.constant 0 : i32
    return %arg0, %c0_i32, %c0_i32_0 : i32, i32, i32
  }
  func.func @transform_1(%arg0: i32, %arg1: i32, %arg2: memref<4xi32, #tpu.memory_space<smem>>) -> (i32, i32, i32) {
    %c0_i32 = arith.constant 0 : i32
    %c0_i32_0 = arith.constant 0 : i32
    %c0_i32_1 = arith.constant 0 : i32
    return %arg0, %c0_i32, %c0_i32_0 : i32, i32, i32
  }
  func.func @transform_2(%arg0: i32, %arg1: i32, %arg2: memref<4xi32, #tpu.memory_space<smem>>) -> (i32, i32) {
    %c0_i32 = arith.constant 0 : i32
    %c0_i32_0 = arith.constant 0 : i32
    %c0_i32_1 = arith.constant 0 : i32
    return %c0_i32, %c0_i32_0 : i32, i32
  }
  func.func @transform_3(%arg0: i32, %arg1: i32, %arg2: memref<4xi32, #tpu.memory_space<smem>>) -> (i32, i32) {
    %c0_i32 = arith.constant 0 : i32
    %c0_i32_0 = arith.constant 0 : i32
    %c0_i32_1 = arith.constant 0 : i32
    return %c0_i32, %c0_i32_0 : i32, i32
  }
  func.func @transform_4(%arg0: i32, %arg1: i32, %arg2: memref<4xi32, #tpu.memory_space<smem>>) -> (i32, i32, i32, i32) {
    %c0_i32 = arith.constant 0 : i32
    %c0_i32_0 = arith.constant 0 : i32
    %c0_i32_1 = arith.constant 0 : i32
    %c0_i32_2 = arith.constant 0 : i32
    return %arg0, %c0_i32, %c0_i32_0, %c0_i32_1 : i32, i32, i32, i32
  }
  func.func @transform_5(%arg0: i32, %arg1: i32, %arg2: memref<4xi32, #tpu.memory_space<smem>>) -> (i32, i32) {
    %c0_i32 = arith.constant 0 : i32
    %c0_i32_0 = arith.constant 0 : i32
    return %c0_i32, %arg1 : i32, i32
  }
  func.func @transform_6(%arg0: i32, %arg1: i32, %arg2: memref<4xi32, #tpu.memory_space<smem>>) -> (i32, i32) {
    %c0_i32 = arith.constant 0 : i32
    %c0_i32_0 = arith.constant 0 : i32
    return %c0_i32, %arg1 : i32, i32
  }
  func.func @transform_7(%arg0: i32, %arg1: i32, %arg2: memref<4xi32, #tpu.memory_space<smem>>) -> (i32, i32, i32) {
    %c0_i32 = arith.constant 0 : i32
    %c0_i32_0 = arith.constant 0 : i32
    return %arg0, %c0_i32, %arg1 : i32, i32, i32
  }
}

</mosaic_0001>

<llo_original>
// kernel: tpu_custom_call.1
$region0: #{tpu_custom_call.1}
  #allocation0 [shape = 'u32[]', space=smem, size = 0x4, offset = 0x4, fixed_abs, tag = 'smem constant byte address 0x4 - core index']
  #allocation1 [shape = 'u32[72,128]{1,0:T(1,128)}', space=vmem, size = 0x9000, scoped, tag = 'internal scratch']
  #allocation2 [shape = 'bf16[16,128]{1,0:T(8,128)(2,1)}', space=vmem, size = 0x1000, scoped, tag = 'scratch operand']
  #allocation3 [shape = 's32[1]{0}', space=sflag, size = 0x4, scoped, tag = 'scoped memory for tpu_custom_call.1']
  #allocation4 [shape = 'u8[512]{0}', space=smem, size = 0x200, scoped, tag = 'prefetched SMEM operand 0']
  %s0 = inlined_call_operand.hbm [shape: s32[4], index: 0, kind: input, shape index: {}]
  %s1 = inlined_call_operand.hbm [shape: bf16[4,8,128], index: 1, kind: input, shape index: {}]
  %s2 = inlined_call_operand.hbm [shape: bf16[4,8,128], index: 2, kind: input, shape index: {}]
  %s3 = inlined_call_operand.hbm [shape: bf16[128,128], index: 3, kind: input, shape index: {}]
  %s4 = inlined_call_operand.hbm [shape: f32[1,128], index: 4, kind: input, shape index: {}]
  %s5 = inlined_call_operand.vmem [shape: f32[2,2,1,128], index: 5, kind: input, shape index: {}]
  %s6 = inlined_call_operand.hbm [shape: bf16[128,256], index: 6, kind: input, shape index: {}]
  %s7 = inlined_call_operand.vmem [shape: f32[1,256], index: 7, kind: input, shape index: {}]
  %s8 = inlined_call_operand.hbm [shape: bf16[4,8,256], index: 8, kind: output, shape index: {}]
  %s9 = sld [smem:[#allocation0]]
  $region85: #{tpu_custom_call.1} parent=0
    _
  %s11 = ssub.s32 1, %s9
  %s12 = scalar_select 0, %s11, %s9
  %s14 = sshll.u32 %s0, 4
  %s15 = int_to_ptr.hbm [resolvable:$true] %s14
  %17 = dma.hbm_to_smem %s15, 16, [#allocation4], [#allocation3]
  %19 = dma.done [#allocation3], 16
  %20 = sfence
  $region1: #{tpu_custom_call.1} parent=0
    #allocation5 [shape = 'u8[8192]{0}', space=vmem, size = 0x2000, scoped, tag = 'input window, operand 1']
    #allocation6 [shape = 's32[2]{0}', space=sflag, size = 0x8, scoped, tag = 'scoped memory for tpu_custom_call.1']
    #allocation7 [shape = 's32[2]{0}', space=sflag, size = 0x8, scoped, tag = 'scoped memory for tpu_custom_call.1']
    #allocation8 [shape = 'u8[8192]{0}', space=vmem, size = 0x2000, scoped, tag = 'input window, operand 2']
    #allocation9 [shape = 's32[2]{0}', space=sflag, size = 0x8, scoped, tag = 'scoped memory for tpu_custom_call.1']
    #allocation10 [shape = 'u8[32768]{0}', space=vmem, size = 0x8000, scoped, tag = 'input window, operand 3, single buffered']
    #allocation11 [shape = 'u8[512]{0}', space=vmem, size = 0x400, scoped, tag = 'input window, operand 4, single buffered']
    #allocation12 [shape = 's32[1]{0}', space=sflag, size = 0x4, scoped, tag = 'scoped memory for tpu_custom_call.1']
    #allocation13 [shape = 'u8[65536]{0}', space=vmem, size = 0x10000, scoped, tag = 'input window, operand 6, single buffered']
    #allocation14 [shape = 'u8[16384]{0}', space=vmem, size = 0x4000, scoped, tag = 'output window, operand 0']
    %21 = vsyncpa [#allocation6], 0
    %s22 = scalar_lea.sflag [#allocation6], 1
    %23 = vsyncpa %s22, 0
    %24 = vsyncpa [#allocation9], 0
    %s25 = scalar_lea.sflag [#allocation9], 1
    %26 = vsyncpa %s25, 0
    %27 = vsyncpa [#allocation12], 0
    %28 = vsyncpa [#allocation7], 0
    %s29 = scalar_lea.sflag [#allocation7], 1
    %30 = vsyncpa %s29, 0
    loop: start=0, step=1, limit=4
    $region2: #{tpu_custom_call.1} parent=1 // loop_pre_header
      _
    $region3: #{tpu_custom_call.1} parent=1 // loop_header
      %s32 = sphi 0, %s36
      %p33 = scmp.ge.s32.totalorder %s32, 4
      %s39 = sphi 0, %s51
      %s40 = sphi 0, %s47
      %s41 = sphi 0, %s39
      %s42 = sphi 0, %s40
      %s43 = sphi 0, %s41
      %s44 = sphi 0, %s42
      %s54 = sphi 0, %s56
      %s57 = sphi 0, %s54
      %s58 = sphi 0, %s57
      %s74 = sphi 0, %s58
      %s80 = sphi 0, %s82
      %s83 = sphi 0, %s80
      %s84 = sphi 0, %s83
      %s100 = sphi 0, %s84
      %s104 = sphi 0, %s104
      %s106 = sphi 0, %s104
      %s107 = sphi 0, %s106
      %s121 = sphi 0, %s107
      %s125 = sphi 0, %s125
      %s127 = sphi 0, %s125
      %s128 = sphi 0, %s127
      %s142 = sphi 0, %s128
      %s148 = sphi 0, %s150
      %s151 = sphi 0, %s148
      %s152 = sphi 0, %s151
      %s168 = sphi 0, %s152
      %s174 = sphi 0, %s176
      %s177 = sphi 0, %s174
      %s178 = sphi 0, %s177
      %s194 = sphi 0, %s178
      %s200 = sphi 0, %s202
      %s203 = sphi 0, %s200
      %s204 = sphi 0, %s203
      %s220 = sphi 0, %s204
      %s228 = sphi 0, %s230
      %s231 = sphi 0, %s228
      %s232 = sphi 0, %s231
      %s248 = sphi 0, %s232
    $region4: #{tpu_custom_call.1} parent=1 // loop_header_branch
      %35 = sbr.rel (%p33) target = $region8
    $region5: #{tpu_custom_call.1} parent=1 // loop_body
      %s37 = ssub.s32 %s32, 1
      %s38 = ssub.s32 %s32, 2
      %s45 = sadd.s32 1, %s40
      %p46 = scmp.ge.s32.totalorder %s45, 1
      %s47 = scalar_select %p46, 0, %s45
      %s48 = sadd.s32 1, %s39
      %s49 = scalar_select %p46, %s48, %s39
      %p50 = scmp.ge.s32.totalorder %s49, 2
      %s51 = scalar_select %p50, 0, %s49
      %s52 = ssub.s32 %s39, %s51
      %p53 = scmp.eq.s32.totalorder %s52, 0
      %s55 = sadd.s32 %s54, 1
      %s56 = scalar_select %p53, %s54, %s55
      %p59 = pneg %p53
      %p60 = scmp.eq.s32.totalorder %s32, 1
      %p61 = por %p59, %p60
      %p62 = scmp.ne.s32.totalorder %s54, %s57
      %p63 = scmp.eq.s32.totalorder %s32, 0
      %p64 = por %p62, %p63
      %p65 = scmp.ne.s32.totalorder %s54, %s57
      %p66 = scmp.eq.s32.totalorder %s37, 1
      %p67 = por %p65, %p66
      %p68 = scmp.ne.s32.totalorder %s57, %s58
      %p69 = scmp.eq.s32.totalorder %s37, 0
      %p70 = por %p68, %p69
      %p71 = scmp.ne.s32.totalorder %s57, %s58
      %p72 = scmp.eq.s32.totalorder %s38, 1
      %p73 = por %p71, %p72
      %p75 = scmp.ne.s32.totalorder %s58, %s74
      %p76 = scmp.eq.s32.totalorder %s38, 0
      %p77 = por %p75, %p76
      %s78 = ssub.s32 %s39, %s51
      %p79 = scmp.eq.s32.totalorder %s78, 0
      %s81 = sadd.s32 %s80, 1
      %s82 = scalar_select %p79, %s80, %s81
      %p85 = pneg %p79
      %p86 = scmp.eq.s32.totalorder %s32, 1
      %p87 = por %p85, %p86
      %p88 = scmp.ne.s32.totalorder %s80, %s83
      %p89 = scmp.eq.s32.totalorder %s32, 0
      %p90 = por %p88, %p89
      %p91 = scmp.ne.s32.totalorder %s80, %s83
      %p92 = scmp.eq.s32.totalorder %s37, 1
      %p93 = por %p91, %p92
      %p94 = scmp.ne.s32.totalorder %s83, %s84
      %p95 = scmp.eq.s32.totalorder %s37, 0
      %p96 = por %p94, %p95
      %p97 = scmp.ne.s32.totalorder %s83, %s84
      %p98 = scmp.eq.s32.totalorder %s38, 1
      %p99 = por %p97, %p98
      %p101 = scmp.ne.s32.totalorder %s84, %s100
      %p102 = scmp.eq.s32.totalorder %s38, 0
      %p103 = por %p101, %p102
      %s105 = sadd.s32 %s104, 1
      %p108 = scmp.eq.s32.totalorder %s32, 1
      %p109 = scmp.ne.s32.totalorder %s104, %s106
      %p110 = scmp.eq.s32.totalorder %s32, 0
      %p111 = por %p109, %p110
      %p112 = scmp.ne.s32.totalorder %s104, %s106
      %p113 = scmp.eq.s32.totalorder %s37, 1
      %p114 = por %p112, %p113
      %p115 = scmp.ne.s32.totalorder %s106, %s107
      %p116 = scmp.eq.s32.totalorder %s37, 0
      %p117 = por %p115, %p116
      %p118 = scmp.ne.s32.totalorder %s106, %s107
      %p119 = scmp.eq.s32.totalorder %s38, 1
      %p120 = por %p118, %p119
      %p122 = scmp.ne.s32.totalorder %s107, %s121
      %p123 = scmp.eq.s32.totalorder %s38, 0
      %p124 = por %p122, %p123
      %s126 = sadd.s32 %s125, 1
      %p129 = scmp.eq.s32.totalorder %s32, 1
      %p130 = scmp.ne.s32.totalorder %s125, %s127
      %p131 = scmp.eq.s32.totalorder %s32, 0
      %p132 = por %p130, %p131
      %p133 = scmp.ne.s32.totalorder %s125, %s127
      %p134 = scmp.eq.s32.totalorder %s37, 1
      %p135 = por %p133, %p134
      %p136 = scmp.ne.s32.totalorder %s127, %s128
      %p137 = scmp.eq.s32.totalorder %s37, 0
      %p138 = por %p136, %p137
      %p139 = scmp.ne.s32.totalorder %s127, %s128
      %p140 = scmp.eq.s32.totalorder %s38, 1
      %p141 = por %p139, %p140
      %p143 = scmp.ne.s32.totalorder %s128, %s142
      %p144 = scmp.eq.s32.totalorder %s38, 0
      %p145 = por %p143, %p144
      %s146 = ssub.s32 %s39, %s51
      %p147 = scmp.eq.s32.totalorder %s146, 0
      %s149 = sadd.s32 %s148, 1
      %s150 = scalar_select %p147, %s148, %s149
      %p153 = pneg %p147
      %p154 = scmp.eq.s32.totalorder %s32, 1
      %p155 = por %p153, %p154
      %p156 = scmp.ne.s32.totalorder %s148, %s151
      %p157 = scmp.eq.s32.totalorder %s32, 0
      %p158 = por %p156, %p157
      %p159 = scmp.ne.s32.totalorder %s148, %s151
      %p160 = scmp.eq.s32.totalorder %s37, 1
      %p161 = por %p159, %p160
      %p162 = scmp.ne.s32.totalorder %s151, %s152
      %p163 = scmp.eq.s32.totalorder %s37, 0
      %p164 = por %p162, %p163
      %p165 = scmp.ne.s32.totalorder %s151, %s152
      %p166 = scmp.eq.s32.totalorder %s38, 1
      %p167 = por %p165, %p166
      %p169 = scmp.ne.s32.totalorder %s152, %s168
      %p170 = scmp.eq.s32.totalorder %s38, 0
      %p171 = por %p169, %p170
      %s172 = ssub.s32 %s40, %s47
      %p173 = scmp.eq.s32.totalorder %s172, 0
      %s175 = sadd.s32 %s174, 1
      %s176 = scalar_select %p173, %s174, %s175
      %p179 = pneg %p173
      %p180 = scmp.eq.s32.totalorder %s32, 1
      %p181 = por %p179, %p180
      %p182 = scmp.ne.s32.totalorder %s174, %s177
      %p183 = scmp.eq.s32.totalorder %s32, 0
      %p184 = por %p182, %p183
      %p185 = scmp.ne.s32.totalorder %s174, %s177
      %p186 = scmp.eq.s32.totalorder %s37, 1
      %p187 = por %p185, %p186
      %p188 = scmp.ne.s32.totalorder %s177, %s178
      %p189 = scmp.eq.s32.totalorder %s37, 0
      %p190 = por %p188, %p189
      %p191 = scmp.ne.s32.totalorder %s177, %s178
      %p192 = scmp.eq.s32.totalorder %s38, 1
      %p193 = por %p191, %p192
      %p195 = scmp.ne.s32.totalorder %s178, %s194
      %p196 = scmp.eq.s32.totalorder %s38, 0
      %p197 = por %p195, %p196
      %s198 = ssub.s32 %s40, %s47
      %p199 = scmp.eq.s32.totalorder %s198, 0
      %s201 = sadd.s32 %s200, 1
      %s202 = scalar_select %p199, %s200, %s201
      %p205 = pneg %p199
      %p206 = scmp.eq.s32.totalorder %s32, 1
      %p207 = por %p205, %p206
      %p208 = scmp.ne.s32.totalorder %s200, %s203
      %p209 = scmp.eq.s32.totalorder %s32, 0
      %p210 = por %p208, %p209
      %p211 = scmp.ne.s32.totalorder %s200, %s203
      %p212 = scmp.eq.s32.totalorder %s37, 1
      %p213 = por %p211, %p212
      %p214 = scmp.ne.s32.totalorder %s203, %s204
      %p215 = scmp.eq.s32.totalorder %s37, 0
      %p216 = por %p214, %p215
      %p217 = scmp.ne.s32.totalorder %s203, %s204
      %p218 = scmp.eq.s32.totalorder %s38, 1
      %p219 = por %p217, %p218
      %p221 = scmp.ne.s32.totalorder %s204, %s220
      %p222 = scmp.eq.s32.totalorder %s38, 0
      %p223 = por %p221, %p222
      %s224 = ssub.s32 %s39, %s51
      %s225 = ssub.s32 %s40, %s47
      %s226 = sor.u32 %s224, %s225
      %p227 = scmp.eq.s32.totalorder %s226, 0
      %s229 = sadd.s32 %s228, 1
      %s230 = scalar_select %p227, %s228, %s229
      %p233 = pneg %p227
      %p234 = scmp.eq.s32.totalorder %s32, 1
      %p235 = por %p233, %p234
      %p236 = scmp.ne.s32.totalorder %s228, %s231
      %p237 = scmp.eq.s32.totalorder %s32, 0
      %p238 = por %p236, %p237
      %p239 = scmp.ne.s32.totalorder %s228, %s231
      %p240 = scmp.eq.s32.totalorder %s37, 1
      %p241 = por %p239, %p240
      %p242 = scmp.ne.s32.totalorder %s231, %s232
      %p243 = scmp.eq.s32.totalorder %s37, 0
      %p244 = por %p242, %p243
      %p245 = scmp.ne.s32.totalorder %s231, %s232
      %p246 = scmp.eq.s32.totalorder %s38, 1
      %p247 = por %p245, %p246
      %p249 = scmp.ne.s32.totalorder %s232, %s248
      %p250 = scmp.eq.s32.totalorder %s38, 0
      %p251 = por %p249, %p250
      %p252 = scmp.le.s32.totalorder 1, %s32
      %p253 = scmp.lt.s32.totalorder %s32, 3
      %p254 = pnand %p252, %p253
      %p255 = pneg %p254
      // Predicated region
      $region9: #{tpu_custom_call.1} parent=5 // pred_check
        _
      $region10: #{tpu_custom_call.1} parent=5 // pred_check_branch
        %257 = sbr.rel (%p254) target = $region12
      $region11: #{tpu_custom_call.1} parent=5 // pred_region
        %s258 = ssub.s32 %s32, 1
        // Predicated region
        $region13: #{tpu_custom_call.1} parent=11 // pred_check
          %p259 = pneg %p117
        $region14: #{tpu_custom_call.1} parent=11 // pred_check_branch
          %261 = sbr.rel (%p259) target = $region16
        $region15: #{tpu_custom_call.1} parent=11 // pred_region
          %263 = vsyncadd [#allocation9], 0
          %s264 = sshll.u32 %s3, 4
          %s265 = int_to_ptr.hbm [resolvable:$true] %s264
          %s266 = sshll.u32 [#allocation10], 4
          %s267 = int_to_ptr.vmem [resolvable:$true] %s266
          %272 = dma.hbm_to_vmem [thread:$0]  %s265, 1024, %s267, [#allocation9], 64, 64, 4
        $region16: #{tpu_custom_call.1} parent=11 // pred_fallthru
          _
        // Predicated region
        $region17: #{tpu_custom_call.1} parent=11 // pred_check
          %p273 = pneg %p138
        $region18: #{tpu_custom_call.1} parent=11 // pred_check_branch
          %275 = sbr.rel (%p273) target = $region20
        $region19: #{tpu_custom_call.1} parent=11 // pred_region
          %277 = vsyncadd [#allocation12], 0
          %s279 = sshll.u32 %s4, 4
          %s280 = int_to_ptr.hbm [resolvable:$true] %s279
          %s281 = sshll.u32 [#allocation11], 4
          %s282 = int_to_ptr.vmem [resolvable:$true] %s281
          %284 = dma.hbm_to_vmem [thread:$0]  %s280, 16, %s282, [#allocation12]
        $region20: #{tpu_custom_call.1} parent=11 // pred_fallthru
          _
        // Predicated region
        $region21: #{tpu_custom_call.1} parent=11 // pred_check
          %p285 = pneg %p190
        $region22: #{tpu_custom_call.1} parent=11 // pred_check_branch
          %287 = sbr.rel (%p285) target = $region24
        $region23: #{tpu_custom_call.1} parent=11 // pred_region
          %s288 = smul.u32 2, %s42
          %290 = vsyncadd [#allocation12], 0
          %s291 = smul.addr %s288, 4
          %s292 = scalar_lea.hbm %s6, %s291
          %s293 = sshll.u32 %s292, 4
          %s294 = int_to_ptr.hbm [resolvable:$true] %s293
          %s295 = sshll.u32 [#allocation13], 4
          %s296 = int_to_ptr.vmem [resolvable:$true] %s295
          %301 = dma.hbm_to_vmem [thread:$0]  %s294, 2048, %s296, [#allocation12], 128, 128, 8
        $region24: #{tpu_custom_call.1} parent=11 // pred_fallthru
          _
        // Predicated region
        $region25: #{tpu_custom_call.1} parent=11 // pred_check
          %p302 = pneg %p216
        $region26: #{tpu_custom_call.1} parent=11 // pred_check_branch
          %304 = sbr.rel (%p302) target = $region28
        $region27: #{tpu_custom_call.1} parent=11 // pred_region
          %s305 = smul.u32 2, %s42
          %p306 = scmp.lt.s32.totalorder %s305, 1
          %s307 = scalar_select %p306, %s305, 1
          %s308 = scalar_lea.vmem %s7, %s307
          %s309 = smul.u32 2, %s42
        $region28: #{tpu_custom_call.1} parent=11 // pred_fallthru
          _
      $region12: #{tpu_custom_call.1} parent=5 // pred_fallthru
        _
      %p310 = scmp.lt.s32.totalorder %s32, 2
      // Predicated region
      $region29: #{tpu_custom_call.1} parent=5 // pred_check
        %p311 = pneg %p310
      $region30: #{tpu_custom_call.1} parent=5 // pred_check_branch
        %313 = sbr.rel (%p311) target = $region32
      $region31: #{tpu_custom_call.1} parent=5 // pred_region
        // Predicated region
        $region33: #{tpu_custom_call.1} parent=31 // pred_check
          %p314 = pneg %p64
        $region34: #{tpu_custom_call.1} parent=31 // pred_check_branch
          %316 = sbr.rel (%p314) target = $region36
        $region35: #{tpu_custom_call.1} parent=31 // pred_region
          %s317 = sand.u32 %s54, 1
          %s318 = scalar_lea.sflag [#allocation6], %s317
          %s319 = sand.u32 %s54, 1
          %s320 = smul.addr %s319, 8
          %s321 = scalar_lea.vmem [#allocation5], %s320
          %s322 = smul.u32 2, %s39
          %324 = vsyncadd %s318, 0
          %s325 = smul.addr %s322, 4
          %s326 = scalar_lea.hbm %s1, %s325
          %s327 = sshll.u32 %s326, 4
          %s328 = int_to_ptr.hbm [resolvable:$true] %s327
          %s329 = sshll.u32 %s321, 4
          %s330 = int_to_ptr.vmem [resolvable:$true] %s329
          %335 = dma.hbm_to_vmem [thread:$0]  %s328, 128, %s330, %s318, 64, 64, 4
        $region36: #{tpu_custom_call.1} parent=31 // pred_fallthru
          _
        // Predicated region
        $region37: #{tpu_custom_call.1} parent=31 // pred_check
          %p336 = pneg %p90
        $region38: #{tpu_custom_call.1} parent=31 // pred_check_branch
          %338 = sbr.rel (%p336) target = $region40
        $region39: #{tpu_custom_call.1} parent=31 // pred_region
          %s339 = sand.u32 %s32, 1
          %s340 = scalar_lea.sflag [#allocation9], %s339
          %s341 = sand.u32 %s80, 1
          %s342 = smul.addr %s341, 8
          %s343 = scalar_lea.vmem [#allocation8], %s342
          %s344 = smul.u32 2, %s39
          %346 = vsyncadd %s340, 0
          %s347 = smul.addr %s344, 4
          %s348 = scalar_lea.hbm %s2, %s347
          %s349 = sshll.u32 %s348, 4
          %s350 = int_to_ptr.hbm [resolvable:$true] %s349
          %s351 = sshll.u32 %s343, 4
          %s352 = int_to_ptr.vmem [resolvable:$true] %s351
          %357 = dma.hbm_to_vmem [thread:$0]  %s350, 128, %s352, %s340, 64, 64, 4
        $region40: #{tpu_custom_call.1} parent=31 // pred_fallthru
          _
        // Predicated region
        $region41: #{tpu_custom_call.1} parent=31 // pred_check
          %p358 = pneg %p158
        $region42: #{tpu_custom_call.1} parent=31 // pred_check_branch
          %360 = sbr.rel (%p358) target = $region44
        $region43: #{tpu_custom_call.1} parent=31 // pred_region
          %p361 = scmp.lt.s32.totalorder %s39, 1
          %s362 = scalar_select %p361, %s39, 1
          %s363 = smul.addr %s362, 2
          %s364 = scalar_lea.vmem %s5, %s363
        $region44: #{tpu_custom_call.1} parent=31 // pred_fallthru
          _
      $region32: #{tpu_custom_call.1} parent=5 // pred_fallthru
        _
      %p365 = scmp.le.s32.totalorder 1, %s32
      %p366 = scmp.lt.s32.totalorder %s32, 3
      %p367 = pnand %p365, %p366
      %p368 = pneg %p367
      // Predicated region
      $region45: #{tpu_custom_call.1} parent=5 // pred_check
        _
      $region46: #{tpu_custom_call.1} parent=5 // pred_check_branch
        %370 = sbr.rel (%p367) target = $region48
      $region47: #{tpu_custom_call.1} parent=5 // pred_region
        %s371 = ssub.s32 %s32, 1
        %s372 = sand.u32 %s57, 1
        %s373 = scalar_lea.sflag [#allocation6], %s372
        %s374 = sand.u32 %s57, 1
        %s375 = smul.addr %s374, 8
        %s376 = scalar_lea.vmem [#allocation5], %s375
        // Predicated region
        $region49: #{tpu_custom_call.1} parent=47 // pred_check
          %p377 = pneg %p70
        $region50: #{tpu_custom_call.1} parent=47 // pred_check_branch
          %379 = sbr.rel (%p377) target = $region52
        $region51: #{tpu_custom_call.1} parent=47 // pred_region
          %381 = dma.done %s373, 128
        $region52: #{tpu_custom_call.1} parent=47 // pred_fallthru
          _
        %s382 = sand.u32 %s37, 1
        %s383 = scalar_lea.sflag [#allocation9], %s382
        %s384 = sand.u32 %s83, 1
        %s385 = smul.addr %s384, 8
        %s386 = scalar_lea.vmem [#allocation8], %s385
        // Predicated region
        $region53: #{tpu_custom_call.1} parent=47 // pred_check
          %p387 = pneg %p96
        $region54: #{tpu_custom_call.1} parent=47 // pred_check_branch
          %389 = sbr.rel (%p387) target = $region56
        $region55: #{tpu_custom_call.1} parent=47 // pred_region
          %391 = dma.done %s383, 128
        $region56: #{tpu_custom_call.1} parent=47 // pred_fallthru
          _
        // Predicated region
        $region57: #{tpu_custom_call.1} parent=47 // pred_check
          %p392 = pneg %p117
        $region58: #{tpu_custom_call.1} parent=47 // pred_check_branch
          %394 = sbr.rel (%p392) target = $region60
        $region59: #{tpu_custom_call.1} parent=47 // pred_region
          %396 = dma.done [#allocation9], 1024
        $region60: #{tpu_custom_call.1} parent=47 // pred_fallthru
          _
        // Predicated region
        $region61: #{tpu_custom_call.1} parent=47 // pred_check
          %p397 = pneg %p138
        $region62: #{tpu_custom_call.1} parent=47 // pred_check_branch
          %399 = sbr.rel (%p397) target = $region64
        $region63: #{tpu_custom_call.1} parent=47 // pred_region
          %401 = dma.done [#allocation12], 16
        $region64: #{tpu_custom_call.1} parent=47 // pred_fallthru
          _
        // Predicated region
        $region65: #{tpu_custom_call.1} parent=47 // pred_check
          %p402 = pneg %p190
        $region66: #{tpu_custom_call.1} parent=47 // pred_check_branch
          %404 = sbr.rel (%p402) target = $region68
        $region67: #{tpu_custom_call.1} parent=47 // pred_region
          %406 = dma.done [#allocation12], 2048
        $region68: #{tpu_custom_call.1} parent=47 // pred_fallthru
          _
        %s407 = sand.u32 %s57, 1
        %s408 = scalar_lea.sflag [#allocation6], %s407
        %s409 = sand.u32 %s57, 1
        %s410 = smul.addr %s409, 8
        %s411 = scalar_lea.vmem [#allocation5], %s410
        %p412 = pneg %p70
        %p413 = pneg %p67
        %s414 = sand.u32 %s37, 1
        %s415 = scalar_lea.sflag [#allocation9], %s414
        %s416 = sand.u32 %s83, 1
        %s417 = smul.addr %s416, 8
        %s418 = scalar_lea.vmem [#allocation8], %s417
        %p419 = pneg %p96
        %p420 = pneg %p93
        %p421 = pneg %p117
        %p422 = pneg %p114
        %p423 = pneg %p138
        %p424 = pneg %p135
        %p425 = scmp.lt.s32.totalorder %s41, 1
        %s426 = scalar_select %p425, %s41, 1
        %s427 = smul.addr %s426, 2
        %s428 = scalar_lea.vmem %s5, %s427
        %p429 = pneg %p164
        %p430 = pneg %p161
        %p431 = pneg %p190
        %p432 = pneg %p187
        %s433 = smul.u32 2, %s42
        %p434 = scmp.lt.s32.totalorder %s433, 1
        %s435 = scalar_select %p434, %s433, 1
        %s436 = scalar_lea.vmem %s7, %s435
        %p437 = pneg %p216
        %p438 = pneg %p213
        %p439 = pneg %p244
        %p440 = pneg %p241
        %s441 = sand.u32 %s231, 1
        %s442 = scalar_lea.sflag [#allocation7], %s441
        %s443 = sand.u32 %s231, 1
        %s444 = smul.addr %s443, 16
        %s445 = scalar_lea.vmem [#allocation14], %s444
        %s446 = smul.u32 2, %s41
        %s447 = smul.u32 2, %s41
        %p448 = scmp.lt.s32.totalorder %s41, 1
        %s449 = scalar_select %p448, %s41, 1
        %s450 = smul.addr %s449, 2
        %s451 = scalar_lea.vmem %s5, %s450
        %s452 = smul.u32 2, %s42
        %s453 = smul.u32 2, %s42
        %p454 = scmp.lt.s32.totalorder %s453, 1
        %s455 = scalar_select %p454, %s453, 1
        %s456 = scalar_lea.vmem %s7, %s455
        %s457 = smul.u32 2, %s42
        %s458 = smul.u32 2, %s41
        %s459 = smul.u32 2, %s42
        %p461 = scmp.eq.s32.totalorder %s42, 0
        // Predicated region
        $region69: #{tpu_custom_call.1} parent=47 // pred_check
          %p462 = pneg %p461
        $region70: #{tpu_custom_call.1} parent=47 // pred_check_branch
          %464 = sbr.rel (%p462) target = $region72
        $region71: #{tpu_custom_call.1} parent=47 // pred_region
          %v465 = vld [vmem:[%s376] sm:$0xf]
          %v466 = vld [vmem:[%s376 + $0x4] sm:$0xf]
          %v467 = vld [vmem:[#allocation10] sm:$0xf]
          %v468 = vld [vmem:[#allocation10 + $0x4] sm:$0xf]
          %v469 = vld [vmem:[#allocation10 + $0x8] sm:$0xf]
          %v470 = vld [vmem:[#allocation10 + $0xc] sm:$0xf]
          %v471 = vld [vmem:[#allocation10 + $0x10] sm:$0xf]
          %v472 = vld [vmem:[#allocation10 + $0x14] sm:$0xf]
          %v473 = vld [vmem:[#allocation10 + $0x18] sm:$0xf]
          %v474 = vld [vmem:[#allocation10 + $0x1c] sm:$0xf]
          %v475 = vld [vmem:[#allocation10 + $0x20] sm:$0xf]
          %v476 = vld [vmem:[#allocation10 + $0x24] sm:$0xf]
          %v477 = vld [vmem:[#allocation10 + $0x28] sm:$0xf]
          %v478 = vld [vmem:[#allocation10 + $0x2c] sm:$0xf]
          %v479 = vld [vmem:[#allocation10 + $0x30] sm:$0xf]
          %v480 = vld [vmem:[#allocation10 + $0x34] sm:$0xf]
          %v481 = vld [vmem:[#allocation10 + $0x38] sm:$0xf]
          %v482 = vld [vmem:[#allocation10 + $0x3c] sm:$0xf]
          %v483 = vld [vmem:[#allocation11] sm:$0x1]
          %v485 = vperm.slane %v483, 0
          %v489 = vunpack.c.l.b16 %v465
          %v490 = vunpack.c.l.b16 %v466
          %v491 = vpack.c.b16 %v490, %v489
          %v509 = vunpack.c.l.b16 %v467
          %v510 = vunpack.c.l.b16 %v468
          %v511 = vunpack.c.l.b16 %v469
          %v512 = vunpack.c.l.b16 %v470
          %v513 = vunpack.c.l.b16 %v471
          %v514 = vunpack.c.l.b16 %v472
          %v515 = vunpack.c.l.b16 %v473
          %v516 = vunpack.c.l.b16 %v474
          %v517 = vunpack.c.l.b16 %v475
          %v518 = vunpack.c.l.b16 %v476
          %v519 = vunpack.c.l.b16 %v477
          %v520 = vunpack.c.l.b16 %v478
          %v521 = vunpack.c.l.b16 %v479
          %v522 = vunpack.c.l.b16 %v480
          %v523 = vunpack.c.l.b16 %v481
          %v524 = vunpack.c.l.b16 %v482
          %v525 = vpack.c.b16 %v510, %v509
          %v526 = vpack.c.b16 %v512, %v511
          %v527 = vpack.c.b16 %v514, %v513
          %v528 = vpack.c.b16 %v516, %v515
          %v529 = vpack.c.b16 %v518, %v517
          %v530 = vpack.c.b16 %v520, %v519
          %v531 = vpack.c.b16 %v522, %v521
          %v532 = vpack.c.b16 %v524, %v523
          %541 = vmatpush.bf16.msra.mxu0 %v532
          %542 = vmatpush.bf16.msra.mxu0 %v531
          %543 = vmatpush.bf16.msra.mxu0 %v530
          %544 = vmatpush.bf16.msra.mxu0 %v529
          %545 = vmatpush.bf16.msra.mxu0 %v528
          %546 = vmatpush.bf16.msra.mxu0 %v527
          %547 = vmatpush.bf16.msra.mxu0 %v526
          %548 = vmatpush.bf16.msra.mxu0 %v525
          %549 = vmatmul.bf16.gmra.mxu0 %v491
          %v550 = vpop.f32.mrf.mxu0
          %v551 = vadd.f32 %v485, %v550
          %v552 = vpop.f32.mrf.mxu0
          %v553 = vadd.f32 %v485, %v552
          %554 = vdwg.mxu0
          %v555 = vtanh.pop %v551
          %v556 = vtanh.pop %v553
          %v557 = vpack.c.bf16 %v555, %v555
          %v558 = vpack.c.bf16 %v556, %v556
          %v559 = vld [vmem:[%s386] sm:$0xf]
          %v560 = vld [vmem:[%s386 + $0x4] sm:$0xf]
          %v561 = vunpack.c.l.bf16 %v559
          %v562 = vunpack.c.l.bf16 %v560
          %v563 = vmul.f32 %v561, 0.088378906
          %v564 = vmul.f32 %v562, 0.088378906
          %v565 = vpack.c.bf16 %v563, %v563
          %v566 = vpack.c.bf16 %v564, %v564
          %567 = vmatpush.bf16.xpose.msra.mxu0 0
          %568 = vmatpush.bf16.xpose.msra.mxu0 0
          %569 = vmatpush.bf16.xpose.msra.mxu0 0
          %570 = vmatpush.bf16.xpose.msra.mxu0 0
          %571 = vmatpush.bf16.xpose.msra.mxu0 0
          %572 = vmatpush.bf16.xpose.msra.mxu0 0
          %573 = vmatpush.bf16.xpose.msra.mxu0 0
          %574 = vmatpush.bf16.xpose.msra.mxu0 %v557
          %575 = vmatmul.bf16.gmra.mxu0 %v565
          %v576 = vpop.f32.mrf.mxu0
          %v577 = vadd.f32 0.0, %v576
          %v578 = vpop.f32.mrf.mxu0
          %579 = vdwg.mxu0
          %580 = vmatpush.bf16.xpose.msra.mxu0 0
          %581 = vmatpush.bf16.xpose.msra.mxu0 0
          %582 = vmatpush.bf16.xpose.msra.mxu0 0
          %583 = vmatpush.bf16.xpose.msra.mxu0 0
          %584 = vmatpush.bf16.xpose.msra.mxu0 0
          %585 = vmatpush.bf16.xpose.msra.mxu0 0
          %586 = vmatpush.bf16.xpose.msra.mxu0 0
          %587 = vmatpush.bf16.xpose.msra.mxu0 %v558
          %588 = vmatmul.bf16.gmra.mxu0 %v566
          %v589 = vpop.f32.mrf.mxu0
          %v590 = vadd.f32 0.0, %v589
          %v591 = vpop.f32.mrf.mxu0
          %592 = vdwg.mxu0
          %v593 = vlaneseq
          %v594 = vand.u32 %v593, 127
          %s595 = smul.u32 %s41, 2
          %s596 = sld [smem:[#allocation4 + %s595]]
          %v597 = vstv %s596
          %s598 = sadd.s32 %s595, 1
          %s599 = sld [smem:[#allocation4 + %s598]]
          %v600 = vstv %s599
          %vm601 = vcmp.lt.s32.totalorder %v594, %v597
          %vm602 = vcmp.lt.s32.totalorder %v594, %v600
          %v603 = vsel %vm601, %v577, -1e+30
          %v604 = vsel %vm602, %v590, -1e+30
          %vm605 = vcmask 64512
          %v606 = vsel %vm605, %v603, -inf
          %607 = vmax.xlane.f32.xlu0 %v606
          %v608 = vpop.xlane.xlu0 %607
          %v609 = vsel %vm605, %v604, -inf
          %610 = vmax.xlane.f32.xlu0 %v609
          %v611 = vpop.xlane.xlu0 %610
          %v612 = vsub.f32 %v603, %v608
          %v613 = vsub.f32 %v604, %v611
          %v614 = vmul.f32 %v612, 1.442695
          %v615 = vpow.pop %v614
          %v616 = vmul.f32 %v613, 1.442695
          %v617 = vpow.pop %v616
          %v618 = vsel %vm605, %v615, 0.0
          %619 = vadd.xlane.f32.xlu0 %v618
          %v620 = vpop.xlane.xlu0 %619
          %v621 = vsel %vm605, %v617, 0.0
          %622 = vadd.xlane.f32.xlu0 %v621
          %v623 = vpop.xlane.xlu0 %622
          %v624 = vrcp.pop %v620
          %v625 = vrcp.pop %v623
          %v626 = vmul.f32 %v615, %v624
          %v627 = vmul.f32 %v617, %v625
          %v628 = vpack.c.bf16 %v626, %v626
          %v629 = vpack.c.bf16 %v627, %v627
          %v631 = vsel %vm605, %v628, 0
          %vm633 = vcmask 1043456
          %v635 = vsel %vm633, %v557, 0
          %637 = vmatpush.bf16.msra.mxu0 0
          %638 = vmatpush.bf16.msra.mxu0 0
          %639 = vmatpush.bf16.msra.mxu0 0
          %640 = vmatpush.bf16.msra.mxu0 0
          %641 = vmatpush.bf16.msra.mxu0 0
          %642 = vmatpush.bf16.msra.mxu0 0
          %643 = vmatpush.bf16.msra.mxu0 0
          %644 = vmatpush.bf16.msra.mxu0 %v635
          %645 = vmatmul.bf16.gmra.mxu0 %v631
          %v646 = vpop.f32.mrf.mxu0
          %v647 = vadd.f32 0.0, %v646
          %v648 = vpop.f32.mrf.mxu0
          %649 = vdwg.mxu0
          %v651 = vsel %vm605, %v629, 0
          %v654 = vsel %vm633, %v558, 0
          %656 = vmatpush.bf16.msra.mxu0 0
          %657 = vmatpush.bf16.msra.mxu0 0
          %658 = vmatpush.bf16.msra.mxu0 0
          %659 = vmatpush.bf16.msra.mxu0 0
          %660 = vmatpush.bf16.msra.mxu0 0
          %661 = vmatpush.bf16.msra.mxu0 0
          %662 = vmatpush.bf16.msra.mxu0 0
          %663 = vmatpush.bf16.msra.mxu0 %v654
          %664 = vmatmul.bf16.gmra.mxu0 %v651
          %v665 = vpop.f32.mrf.mxu0
          %v666 = vadd.f32 0.0, %v665
          %v667 = vpop.f32.mrf.mxu0
          %668 = vdwg.mxu0
          %v669 = vadd.f32 %v561, %v647
          %v670 = vadd.f32 %v562, %v666
          %v671 = vld [vmem:[%s451] sm:$0x1]
          %v672 = vld [vmem:[%s451 + $0x1] sm:$0x1]
          %v675 = vperm.slane %v671, 0
          %v676 = vperm.slane %v672, 0
          %v679 = vadd.f32 %v669, %v675
          %v680 = vadd.f32 %v670, %v676
          %v681 = vtanh.pop %v679
          %v682 = vtanh.pop %v680
          %v683 = vpack.c.bf16 %v681, %v681
          %v684 = vpack.c.bf16 %v682, %v682
          %685 = vst [vmem:[#allocation2] sm:$0xf] %v683
          %686 = vst [vmem:[#allocation2 + $0x4] sm:$0xf] %v684
        $region72: #{tpu_custom_call.1} parent=47 // pred_fallthru
          _
        %v687 = vld [vmem:[#allocation2] sm:$0xf]
        %v688 = vld [vmem:[#allocation2 + $0x4] sm:$0xf]
        %v689 = vld [vmem:[#allocation13] sm:$0xff]
        %v690 = vld [vmem:[#allocation13 + $0x8] sm:$0xff]
        %v691 = vld [vmem:[#allocation13 + $0x10] sm:$0xff]
        %v692 = vld [vmem:[#allocation13 + $0x18] sm:$0xff]
        %v693 = vld [vmem:[#allocation13 + $0x20] sm:$0xff]
        %v694 = vld [vmem:[#allocation13 + $0x28] sm:$0xff]
        %v695 = vld [vmem:[#allocation13 + $0x30] sm:$0xff]
        %v696 = vld [vmem:[#allocation13 + $0x38] sm:$0xff]
        %v697 = vld [vmem:[#allocation13 + $0x40] sm:$0xff]
        %v698 = vld [vmem:[#allocation13 + $0x48] sm:$0xff]
        %v699 = vld [vmem:[#allocation13 + $0x50] sm:$0xff]
        %v700 = vld [vmem:[#allocation13 + $0x58] sm:$0xff]
        %v701 = vld [vmem:[#allocation13 + $0x60] sm:$0xff]
        %v702 = vld [vmem:[#allocation13 + $0x68] sm:$0xff]
        %v703 = vld [vmem:[#allocation13 + $0x70] sm:$0xff]
        %v704 = vld [vmem:[#allocation13 + $0x78] sm:$0xff]
        %v705 = vld [vmem:[%s456] sm:$0x3]
        %v707 = vperm.slane %v705, 0
        %v708 = vperm.slane %v705, 1
        %v713 = vunpack.c.l.b16 %v687
        %v714 = vunpack.c.l.b16 %v688
        %v715 = vpack.c.b16 %v714, %v713
        %v733 = vunpack.c.l.b16 %v689
        %v734 = vunpack.c.h.b16 %v689
        %v735 = vunpack.c.l.b16 %v690
        %v736 = vunpack.c.h.b16 %v690
        %v737 = vunpack.c.l.b16 %v691
        %v738 = vunpack.c.h.b16 %v691
        %v739 = vunpack.c.l.b16 %v692
        %v740 = vunpack.c.h.b16 %v692
        %v741 = vunpack.c.l.b16 %v693
        %v742 = vunpack.c.h.b16 %v693
        %v743 = vunpack.c.l.b16 %v694
        %v744 = vunpack.c.h.b16 %v694
        %v745 = vunpack.c.l.b16 %v695
        %v746 = vunpack.c.h.b16 %v695
        %v747 = vunpack.c.l.b16 %v696
        %v748 = vunpack.c.h.b16 %v696
        %v749 = vunpack.c.l.b16 %v697
        %v750 = vunpack.c.h.b16 %v697
        %v751 = vunpack.c.l.b16 %v698
        %v752 = vunpack.c.h.b16 %v698
        %v753 = vunpack.c.l.b16 %v699
        %v754 = vunpack.c.h.b16 %v699
        %v755 = vunpack.c.l.b16 %v700
        %v756 = vunpack.c.h.b16 %v700
        %v757 = vunpack.c.l.b16 %v701
        %v758 = vunpack.c.h.b16 %v701
        %v759 = vunpack.c.l.b16 %v702
        %v760 = vunpack.c.h.b16 %v702
        %v761 = vunpack.c.l.b16 %v703
        %v762 = vunpack.c.h.b16 %v703
        %v763 = vunpack.c.l.b16 %v704
        %v764 = vunpack.c.h.b16 %v704
        %v765 = vpack.c.b16 %v735, %v733
        %v766 = vpack.c.b16 %v736, %v734
        %v767 = vpack.c.b16 %v739, %v737
        %v768 = vpack.c.b16 %v740, %v738
        %v769 = vpack.c.b16 %v743, %v741
        %v770 = vpack.c.b16 %v744, %v742
        %v771 = vpack.c.b16 %v747, %v745
        %v772 = vpack.c.b16 %v748, %v746
        %v773 = vpack.c.b16 %v751, %v749
        %v774 = vpack.c.b16 %v752, %v750
        %v775 = vpack.c.b16 %v755, %v753
        %v776 = vpack.c.b16 %v756, %v754
        %v777 = vpack.c.b16 %v759, %v757
        %v778 = vpack.c.b16 %v760, %v758
        %v779 = vpack.c.b16 %v763, %v761
        %v780 = vpack.c.b16 %v764, %v762
        %797 = vmatpush.bf16.msra.mxu0 %v779
        %798 = vmatpush.bf16.msra.mxu0 %v777
        %799 = vmatpush.bf16.msra.mxu0 %v775
        %800 = vmatpush.bf16.msra.mxu0 %v773
        %801 = vmatpush.bf16.msra.mxu0 %v771
        %802 = vmatpush.bf16.msra.mxu0 %v769
        %803 = vmatpush.bf16.msra.mxu0 %v767
        %804 = vmatpush.bf16.msra.mxu0 %v765
        %805 = vmatmul.bf16.gmra.mxu0 %v715
        %v806 = vpop.f32.mrf.mxu0
        %v807 = vadd.f32 %v707, %v806
        %v808 = vpop.f32.mrf.mxu0
        %v809 = vadd.f32 %v707, %v808
        %810 = vdwg.mxu0
        %811 = vmatpush.bf16.msra.mxu0 %v780
        %812 = vmatpush.bf16.msra.mxu0 %v778
        %813 = vmatpush.bf16.msra.mxu0 %v776
        %814 = vmatpush.bf16.msra.mxu0 %v774
        %815 = vmatpush.bf16.msra.mxu0 %v772
        %816 = vmatpush.bf16.msra.mxu0 %v770
        %817 = vmatpush.bf16.msra.mxu0 %v768
        %818 = vmatpush.bf16.msra.mxu0 %v766
        %819 = vmatmul.bf16.gmra.mxu0 %v715
        %v820 = vpop.f32.mrf.mxu0
        %v821 = vadd.f32 %v708, %v820
        %v822 = vpop.f32.mrf.mxu0
        %v823 = vadd.f32 %v708, %v822
        %824 = vdwg.mxu0
        %v825 = vpack.c.bf16 %v821, %v807
        %v826 = vpack.c.bf16 %v823, %v809
        %827 = vst [vmem:[%s445] sm:$0xff] %v825
        %828 = vst [vmem:[%s445 + $0x8] sm:$0xff] %v826
        %s829 = sand.u32 %s231, 1
        %s830 = scalar_lea.sflag [#allocation7], %s829
        %s831 = sand.u32 %s231, 1
        %s832 = smul.addr %s831, 16
        %s833 = scalar_lea.vmem [#allocation14], %s832
        // Predicated region
        $region73: #{tpu_custom_call.1} parent=47 // pred_check
          %p834 = pneg %p241
        $region74: #{tpu_custom_call.1} parent=47 // pred_check_branch
          %836 = sbr.rel (%p834) target = $region76
        $region75: #{tpu_custom_call.1} parent=47 // pred_region
          %s837 = smul.u32 2, %s41
          %s838 = smul.u32 2, %s42
          %840 = vsyncadd %s830, 0
          %s841 = smul.addr %s837, 2
          %s842 = sadd.s32 %s838, %s841
          %s843 = smul.addr %s842, 4
          %s844 = scalar_lea.hbm %s8, %s843
          %s845 = sshll.u32 %s833, 4
          %s846 = int_to_ptr.vmem [resolvable:$true] %s845
          %s847 = sshll.u32 %s844, 4
          %s848 = int_to_ptr.hbm [resolvable:$true] %s847
          %853 = dma.vmem_to_hbm [thread:$0]  %s846, 256, %s848, %s830, 128, 128, 8
        $region76: #{tpu_custom_call.1} parent=47 // pred_fallthru
          _
      $region48: #{tpu_custom_call.1} parent=5 // pred_fallthru
        _
      %p854 = scmp.le.s32.totalorder 2, %s32
      // Predicated region
      $region77: #{tpu_custom_call.1} parent=5 // pred_check
        %p855 = pneg %p854
      $region78: #{tpu_custom_call.1} parent=5 // pred_check_branch
        %857 = sbr.rel (%p855) target = $region80
      $region79: #{tpu_custom_call.1} parent=5 // pred_region
        %s858 = ssub.s32 %s32, 2
        // Predicated region
        $region81: #{tpu_custom_call.1} parent=79 // pred_check
          %p859 = pneg %p247
        $region82: #{tpu_custom_call.1} parent=79 // pred_check_branch
          %861 = sbr.rel (%p859) target = $region84
        $region83: #{tpu_custom_call.1} parent=79 // pred_region
          %s862 = sand.u32 %s232, 1
          %s863 = scalar_lea.sflag [#allocation7], %s862
          %s864 = sand.u32 %s232, 1
          %s865 = smul.addr %s864, 16
          %s866 = scalar_lea.vmem [#allocation14], %s865
          %868 = dma.done %s863, 256
        $region84: #{tpu_custom_call.1} parent=79 // pred_fallthru
          _
      $region80: #{tpu_custom_call.1} parent=5 // pred_fallthru
        _
    $region6: #{tpu_custom_call.1} parent=1 // loop_footer
      %s36 = sadd.s32 1, %s32
    $region7: #{tpu_custom_call.1} parent=1 // loop_footer_branch
      %31 = sbr.rel target = $region3
    $region8: #{tpu_custom_call.1} parent=1 // loop_exit
      _
    %869 = vsyncpa [#allocation6], 1
    %s870 = scalar_lea.sflag [#allocation6], 1
    %871 = vsyncpa %s870, 1
    %872 = vsyncpa [#allocation9], 1
    %s873 = scalar_lea.sflag [#allocation9], 1
    %874 = vsyncpa %s873, 1
    %875 = vsyncpa [#allocation12], 1
    %876 = vsyncpa [#allocation7], 1
    %s877 = scalar_lea.sflag [#allocation7], 1
    %878 = vsyncpa %s877, 1

</llo_original>
